<compile_context>
chip_gen: v5e
topology: v5e:2x2
jax: 0.10.0
libtpu: 0.0.40
codegen_flags: <defaults>
</compile_context>

<pallas_src>
import functools
import math

import jax
import jax.numpy as jnp
from jax.experimental import pallas as pl
from jax.experimental.pallas import tpu as pltpu

_LANES = 128
_ROW_ALIGN = 32                      # bool/int8 second-minor packing multiple
_BLOCK_BYTE_BUDGET = 8 * 1024 * 1024 # per block-set (all ins + out, 1 buffer)
_SPLIT_BYTE_THRESHOLD = 4 * 1024 * 1024
_MEGACORE_MIN_STEPS = 8


def _round_up(x, m):
    return (x + m - 1) // m * m


def _qfl_kernel(pred_ref, gt_ref, mask_ref, out_ref, *, beta):
    # Compute in f32 regardless of input dtype.
    x = pred_ref[...].astype(jnp.float32)
    gt = gt_ref[...].astype(jnp.float32)
    m = mask_ref[...]
    is_pos = m if m.dtype == jnp.bool_ else (m != 0)

    # Shared transcendentals: e = exp(-|x|) feeds both sigmoid and log1p term.
    e = jnp.exp(-jnp.abs(x))                       # EUP exp
    sig = jnp.where(x >= 0, 1.0, e) / (1.0 + e)    # exact sigmoid(x)
    log_term = jnp.log1p(e)                        # EUP log1p
    relu_x = jnp.maximum(x, 0.0)

    # Numerically-stable BCE-with-logits: max(x,0) - x*t + log1p(exp(-|x|))
    bce_zero = relu_x + log_term                   # target = 0
    bce = jnp.where(is_pos, bce_zero - x * gt, bce_zero)

    # Select the modulating base first, then exponentiate once.
    base = jnp.where(is_pos, jnp.abs(gt - sig), sig)

    if beta == 2.0:                                 # default path: plain square (VPU)
        p = base * base
    elif float(beta).is_integer() and 0.0 < beta <= 4.0:
        p = base
        for _ in range(int(beta) - 1):
            p = p * base
    else:                                           # general float exponent via exp/log
        tiny = jnp.finfo(jnp.float32).tiny
        p = jnp.where(base > 0.0,
                      jnp.exp(beta * jnp.log(jnp.maximum(base, tiny))),
                      0.0)

    out_ref[...] = (bce * p).astype(out_ref.dtype)


def quality_focal_loss(pred_score, gt_score, gt_target_pos_mask, beta=2.0,
                       *, row_tile=4096):
    """Pallas QFL.  pred_score/gt_score: float arrays, gt_target_pos_mask: bool,
    all the same shape.  Returns elementwise loss with pred_score's dtype/shape."""
    orig_shape = pred_score.shape
    out_dtype = pred_score.dtype
    total = math.prod(orig_shape) if orig_shape else 1

    # ---- lane-dense (M2, 128) view (pad only when total % 128 != 0) ----
    pad = (-total) % _LANES
    pred_flat = pred_score.reshape(-1)
    gt_flat = gt_score.reshape(-1)
    mask_flat = gt_target_pos_mask.reshape(-1)
    if mask_flat.dtype != jnp.bool_:
        mask_flat = mask_flat != 0
    if pad:
        pred_flat = jnp.pad(pred_flat, (0, pad))
        gt_flat = jnp.pad(gt_flat, (0, pad))
        mask_flat = jnp.pad(mask_flat, (0, pad))    # pads with False

    C2 = _LANES
    M2 = (total + pad) // C2
    pred2 = pred_flat.reshape(M2, C2)
    gt2 = gt_flat.reshape(M2, C2)
    mask2 = mask_flat.reshape(M2, C2)

    # ---- byte-capped tile selection ----
    elem_bytes = (pred2.dtype.itemsize + gt2.dtype.itemsize + 1
                  + jnp.dtype(out_dtype).itemsize)
    row_bytes = C2 * elem_bytes
    total_bytes = M2 * row_bytes

    tm_cap = max(_ROW_ALIGN,
                 (_BLOCK_BYTE_BUDGET // row_bytes) // _ROW_ALIGN * _ROW_ALIGN)
    tm = min(int(row_tile), tm_cap)
    if total_bytes > _SPLIT_BYTE_THRESHOLD:
        # Ensure several grid steps so the row axis can shard across both
        # TensorCores on v7x (harmless on single-TC v5e/v6e).
        tm = min(tm, _round_up(pl.cdiv(M2, _MEGACORE_MIN_STEPS), _ROW_ALIGN))
    if tm >= M2:
        tm = M2                                     # single block == full dims
    grid = (pl.cdiv(M2, tm),)

    kernel = functools.partial(_qfl_kernel, beta=float(beta))

    n_elems = M2 * C2
    bytes_accessed = (n_elems * pred2.dtype.itemsize
                      + n_elems * gt2.dtype.itemsize
                      + n_elems                                   # bool mask (1 B)
                      + n_elems * jnp.dtype(out_dtype).itemsize)  # output
    cost = pl.CostEstimate(flops=14 * n_elems,
                           transcendentals=2 * n_elems,
                           bytes_accessed=int(bytes_accessed))

    out2 = pl.pallas_call(
        kernel,
        out_shape=jax.ShapeDtypeStruct((M2, C2), out_dtype),
        grid_spec=pl.GridSpec(
            grid=grid,
            in_specs=[
                pl.BlockSpec((tm, C2), lambda i: (i, 0)),   # pred
                pl.BlockSpec((tm, C2), lambda i: (i, 0)),   # gt
                pl.BlockSpec((tm, C2), lambda i: (i, 0)),   # mask (bool)
            ],
            out_specs=pl.BlockSpec((tm, C2), lambda i: (i, 0)),
        ),
        compiler_params=pltpu.CompilerParams(
            dimension_semantics=("parallel",),
            vmem_limit_bytes=32 * 1024 * 1024),
        cost_estimate=cost,
    )(pred2, gt2, mask2)

    if pad:
        return out2.reshape(-1)[:total].reshape(orig_shape)
    return out2.reshape(orig_shape)


def _reference_qfl(pred_score, gt_score, mask, beta=2.0):
    # Pure-JAX reference mirroring the PyTorch module (f32 math).
    x = pred_score.astype(jnp.float32)
    gt = gt_score.astype(jnp.float32)
    sig = jax.nn.sigmoid(x)
    log_term = jnp.log1p(jnp.exp(-jnp.abs(x)))
    relu_x = jnp.maximum(x, 0.0)
    bce_zero = relu_x + log_term
    bce_gt = relu_x - x * gt + log_term
    loss = bce_zero * sig ** beta
    loss_pos = bce_gt * jnp.abs(gt - sig) ** beta
    return jnp.where(mask, loss_pos, loss).astype(pred_score.dtype)


if __name__ == "__main__":
    key = jax.random.PRNGKey(0)
    k1, k2, k3 = jax.random.split(key, 3)

    # Small YOLO-like shapes: batch=2, anchors=64, classes=128
    B, A, C = 2, 64, 128
    pred_score = jax.random.normal(k1, (B, A, C), dtype=jnp.float32) * 2.0
    gt_score = jax.random.uniform(k2, (B, A, C), dtype=jnp.float32)
    gt_target_pos_mask = jax.random.uniform(k3, (B, A, C)) > 0.8  # sparse positives

    for beta in (2.0, 1.5):   # default squared path + general-exponent path
        loss = quality_focal_loss(pred_score, gt_score, gt_target_pos_mask, beta=beta)
        loss = jax.block_until_ready(loss)
        ref = _reference_qfl(pred_score, gt_score, gt_target_pos_mask, beta=beta)
        assert loss.shape == pred_score.shape and loss.dtype == pred_score.dtype
        assert jnp.allclose(loss, ref, atol=1e-3, rtol=1e-3), \
            f"mismatch vs reference (beta={beta})"

    # Non-128-aligned class count (e.g. 80 classes) -> exercises pad path.
    k4, k5, k6 = jax.random.split(jax.random.PRNGKey(1), 3)
    B2, A2, Ccls = 2, 37, 80
    pred_b = jax.random.normal(k4, (B2, A2, Ccls), dtype=jnp.float32) * 2.0
    gt_b = jax.random.uniform(k5, (B2, A2, Ccls), dtype=jnp.float32)
    mask_b = jax.random.uniform(k6, (B2, A2, Ccls)) > 0.7
    loss_b = jax.block_until_ready(
        quality_focal_loss(pred_b, gt_b, mask_b, beta=2.0))
    ref_b = _reference_qfl(pred_b, gt_b, mask_b, beta=2.0)
    assert jnp.allclose(loss_b, ref_b, atol=1e-3, rtol=1e-3), \
        "mismatch vs reference (odd shape)"

    print("KERNEL_OK")
</pallas_src>

<mosaic_0001>
module attributes {stable_mosaic.version = 11 : i64} {
  func.func @_qfl_kernel(%arg0: i32, %arg1: memref<128x128xf32, #tpu.memory_space<vmem>>, %arg2: memref<128x128xf32, #tpu.memory_space<vmem>>, %arg3: memref<128x128xi32, #tpu.memory_space<vmem>>, %arg4: memref<128x128xf32, #tpu.memory_space<vmem>>) attributes {dimension_semantics = [#tpu.dimension_semantics<parallel>], iteration_bounds = array<i64: 1>, scalar_prefetch = 0 : i64, scratch_operands = 0 : i64, tpu.core_type = #tpu.core_type<tc>, window_params = [{transform_indices = @transform_0, window_bounds = array<i64: 128, 128>}, {transform_indices = @transform_1, window_bounds = array<i64: 128, 128>}, {transform_indices = @transform_2, window_bounds = array<i64: 128, 128>}, {transform_indices = @transform_3, window_bounds = array<i64: 128, 128>}]} {
    %c0 = arith.constant 0 : index
    %c0_0 = arith.constant 0 : index
    %0 = vector.load %arg1[%c0, %c0_0] : memref<128x128xf32, #tpu.memory_space<vmem>>, vector<128x128xf32>
    %c0_1 = arith.constant 0 : index
    %c0_2 = arith.constant 0 : index
    %1 = vector.load %arg2[%c0_1, %c0_2] : memref<128x128xf32, #tpu.memory_space<vmem>>, vector<128x128xf32>
    %c0_3 = arith.constant 0 : index
    %c0_4 = arith.constant 0 : index
    %2 = vector.load %arg3[%c0_3, %c0_4] : memref<128x128xi32, #tpu.memory_space<vmem>>, vector<128x128xi32>
    %cst = arith.constant dense<0> : vector<128x128xi32>
    %3 = arith.cmpi ne, %2, %cst : vector<128x128xi32>
    %4 = math.absf %0 : vector<128x128xf32>
    %cst_5 = arith.constant 0.000000e+00 : f32
    %5 = vector.broadcast %cst_5 : f32 to vector<128x128xf32>
    %6 = arith.subf %5, %4 : vector<128x128xf32>
    %7 = math.exp %6 : vector<128x128xf32>
    %cst_6 = arith.constant 0.000000e+00 : f32
    %8 = vector.broadcast %cst_6 : f32 to vector<128x128xf32>
    %9 = arith.cmpf oge, %0, %8 : vector<128x128xf32>
    %cst_7 = arith.constant 1.000000e+00 : f32
    %10 = vector.broadcast %cst_7 : f32 to vector<128x128xf32>
    %11 = arith.select %9, %10, %7 : vector<128x128xi1>, vector<128x128xf32>
    %cst_8 = arith.constant 1.000000e+00 : f32
    %12 = vector.broadcast %cst_8 : f32 to vector<128x128xf32>
    %13 = arith.addf %12, %7 : vector<128x128xf32>
    %14 = arith.divf %11, %13 : vector<128x128xf32>
    %15 = math.log1p %7 : vector<128x128xf32>
    %cst_9 = arith.constant 0.000000e+00 : f32
    %16 = vector.broadcast %cst_9 : f32 to vector<128x128xf32>
    %17 = arith.maximumf %0, %16 : vector<128x128xf32>
    %18 = arith.addf %17, %15 : vector<128x128xf32>
    %19 = arith.mulf %0, %1 : vector<128x128xf32>
    %20 = arith.subf %18, %19 : vector<128x128xf32>
    %21 = arith.select %3, %20, %18 : vector<128x128xi1>, vector<128x128xf32>
    %22 = arith.subf %1, %14 : vector<128x128xf32>
    %23 = math.absf %22 : vector<128x128xf32>
    %24 = arith.select %3, %23, %14 : vector<128x128xi1>, vector<128x128xf32>
    %25 = arith.mulf %24, %24 : vector<128x128xf32>
    %26 = arith.mulf %21, %25 : vector<128x128xf32>
    %c0_10 = arith.constant 0 : index
    %c0_11 = arith.constant 0 : index
    %27 = vector.load %arg4[%c0_10, %c0_11] : memref<128x128xf32, #tpu.memory_space<vmem>>, vector<128x128xf32>
    tpu.vector_store %arg4[%c0_10, %c0_11], %26 {strides = array<i32>} : memref<128x128xf32, #tpu.memory_space<vmem>>, vector<128x128xf32>,
    return
  }
  func.func @transform_0(%arg0: i32) -> (i32, i32) {
    %c0_i32 = arith.constant 0 : i32
    %c0_i32_0 = arith.constant 0 : i32
    return %arg0, %c0_i32 : i32, i32
  }
  func.func @transform_1(%arg0: i32) -> (i32, i32) {
    %c0_i32 = arith.constant 0 : i32
    %c0_i32_0 = arith.constant 0 : i32
    return %arg0, %c0_i32 : i32, i32
  }
  func.func @transform_2(%arg0: i32) -> (i32, i32) {
    %c0_i32 = arith.constant 0 : i32
    %c0_i32_0 = arith.constant 0 : i32
    return %arg0, %c0_i32 : i32, i32
  }
  func.func @transform_3(%arg0: i32) -> (i32, i32) {
    %c0_i32 = arith.constant 0 : i32
    %c0_i32_0 = arith.constant 0 : i32
    return %arg0, %c0_i32 : i32, i32
  }
}

</mosaic_0001>

<llo_original>
// kernel: tpu_custom_call.1
$region0: #{tpu_custom_call.1}
  #allocation0 [shape = 'u32[]', space=smem, size = 0x4, offset = 0x4, fixed_abs, tag = 'smem constant byte address 0x4 - core index']
  #allocation1 [shape = 'u32[72,128]{1,0:T(1,128)}', space=vmem, size = 0x9000, scoped, tag = 'internal scratch']
  %s0 = inlined_call_operand.vmem [shape: f32[128,128], index: 0, kind: input, shape index: {}]
  %s1 = inlined_call_operand.hbm [shape: f32[128,128], index: 1, kind: input, shape index: {}]
  %s2 = inlined_call_operand.vmem [shape: s32[128,128], index: 2, kind: input, shape index: {}]
  %s3 = inlined_call_operand.hbm [shape: f32[128,128], index: 3, kind: output, shape index: {}]
  %s4 = sld [smem:[#allocation0]]
  $region26: #{tpu_custom_call.1} parent=0
    _
  %s6 = ssub.s32 1, %s4
  %s7 = scalar_select 0, %s6, %s4
  $region1: #{tpu_custom_call.1} parent=0
    #allocation2 [shape = 'u8[65536]{0}', space=vmem, size = 0x10000, scoped, tag = 'input window, operand 1, single buffered']
    #allocation3 [shape = 's32[1]{0}', space=sflag, size = 0x4, scoped, tag = 'scoped memory for tpu_custom_call.1']
    #allocation4 [shape = 's32[1]{0}', space=sflag, size = 0x4, scoped, tag = 'scoped memory for tpu_custom_call.1']
    #allocation5 [shape = 'u8[65536]{0}', space=vmem, size = 0x10000, scoped, tag = 'output window, operand 0, single buffered']
    %8 = vsyncpa [#allocation3], 0
    %9 = vsyncpa [#allocation4], 0
    // Predicated region
    $region2: #{tpu_custom_call.1} parent=1 // pred_check
      _
    $region3: #{tpu_custom_call.1} parent=1 // pred_check_branch
      %11 = sbr.rel (0) target = $region5
    $region4: #{tpu_custom_call.1} parent=1 // pred_region
      _
    $region5: #{tpu_custom_call.1} parent=1 // pred_fallthru
      _
    // Predicated region
    $region6: #{tpu_custom_call.1} parent=1 // pred_check
      _
    $region7: #{tpu_custom_call.1} parent=1 // pred_check_branch
      %13 = sbr.rel (0) target = $region9
    $region8: #{tpu_custom_call.1} parent=1 // pred_region
      %15 = vsyncadd [#allocation3], 0
      %s16 = sshll.u32 %s1, 4
      %s17 = int_to_ptr.hbm [resolvable:$true] %s16
      %s18 = sshll.u32 [#allocation2], 4
      %s19 = int_to_ptr.vmem [resolvable:$true] %s18
      %24 = dma.hbm_to_vmem [thread:$0]  %s17, 2048, %s19, [#allocation3], 128, 128, 8
    $region9: #{tpu_custom_call.1} parent=1 // pred_fallthru
      _
    // Predicated region
    $region10: #{tpu_custom_call.1} parent=1 // pred_check
      _
    $region11: #{tpu_custom_call.1} parent=1 // pred_check_branch
      %26 = sbr.rel (0) target = $region13
    $region12: #{tpu_custom_call.1} parent=1 // pred_region
      _
    $region13: #{tpu_custom_call.1} parent=1 // pred_fallthru
      _
    // Predicated region
    $region14: #{tpu_custom_call.1} parent=1 // pred_check
      _
    $region15: #{tpu_custom_call.1} parent=1 // pred_check_branch
      %28 = sbr.rel (0) target = $region17
    $region16: #{tpu_custom_call.1} parent=1 // pred_region
      %30 = dma.done [#allocation3], 2048
    $region17: #{tpu_custom_call.1} parent=1 // pred_fallthru
      _
    %v31 = vld [vmem:[%s0] sm:$0xff]
    %v32 = vld [vmem:[%s0 + $0x8] sm:$0xff]
    %v33 = vld [vmem:[%s0 + $0x10] sm:$0xff]
    %v34 = vld [vmem:[%s0 + $0x18] sm:$0xff]
    %v35 = vld [vmem:[%s0 + $0x20] sm:$0xff]
    %v36 = vld [vmem:[%s0 + $0x28] sm:$0xff]
    %v37 = vld [vmem:[%s0 + $0x30] sm:$0xff]
    %v38 = vld [vmem:[%s0 + $0x38] sm:$0xff]
    %v39 = vld [vmem:[%s0 + $0x40] sm:$0xff]
    %v40 = vld [vmem:[%s0 + $0x48] sm:$0xff]
    %v41 = vld [vmem:[%s0 + $0x50] sm:$0xff]
    %v42 = vld [vmem:[%s0 + $0x58] sm:$0xff]
    %v43 = vld [vmem:[%s0 + $0x60] sm:$0xff]
    %v44 = vld [vmem:[%s0 + $0x68] sm:$0xff]
    %v45 = vld [vmem:[%s0 + $0x70] sm:$0xff]
    %v46 = vld [vmem:[%s0 + $0x78] sm:$0xff]
    %v47 = vld [vmem:[#allocation2] sm:$0xff]
    %v48 = vld [vmem:[#allocation2 + $0x8] sm:$0xff]
    %v49 = vld [vmem:[#allocation2 + $0x10] sm:$0xff]
    %v50 = vld [vmem:[#allocation2 + $0x18] sm:$0xff]
    %v51 = vld [vmem:[#allocation2 + $0x20] sm:$0xff]
    %v52 = vld [vmem:[#allocation2 + $0x28] sm:$0xff]
    %v53 = vld [vmem:[#allocation2 + $0x30] sm:$0xff]
    %v54 = vld [vmem:[#allocation2 + $0x38] sm:$0xff]
    %v55 = vld [vmem:[#allocation2 + $0x40] sm:$0xff]
    %v56 = vld [vmem:[#allocation2 + $0x48] sm:$0xff]
    %v57 = vld [vmem:[#allocation2 + $0x50] sm:$0xff]
    %v58 = vld [vmem:[#allocation2 + $0x58] sm:$0xff]
    %v59 = vld [vmem:[#allocation2 + $0x60] sm:$0xff]
    %v60 = vld [vmem:[#allocation2 + $0x68] sm:$0xff]
    %v61 = vld [vmem:[#allocation2 + $0x70] sm:$0xff]
    %v62 = vld [vmem:[#allocation2 + $0x78] sm:$0xff]
    %v63 = vld [vmem:[%s2] sm:$0xff]
    %v64 = vld [vmem:[%s2 + $0x8] sm:$0xff]
    %v65 = vld [vmem:[%s2 + $0x10] sm:$0xff]
    %v66 = vld [vmem:[%s2 + $0x18] sm:$0xff]
    %v67 = vld [vmem:[%s2 + $0x20] sm:$0xff]
    %v68 = vld [vmem:[%s2 + $0x28] sm:$0xff]
    %v69 = vld [vmem:[%s2 + $0x30] sm:$0xff]
    %v70 = vld [vmem:[%s2 + $0x38] sm:$0xff]
    %v71 = vld [vmem:[%s2 + $0x40] sm:$0xff]
    %v72 = vld [vmem:[%s2 + $0x48] sm:$0xff]
    %v73 = vld [vmem:[%s2 + $0x50] sm:$0xff]
    %v74 = vld [vmem:[%s2 + $0x58] sm:$0xff]
    %v75 = vld [vmem:[%s2 + $0x60] sm:$0xff]
    %v76 = vld [vmem:[%s2 + $0x68] sm:$0xff]
    %v77 = vld [vmem:[%s2 + $0x70] sm:$0xff]
    %v78 = vld [vmem:[%s2 + $0x78] sm:$0xff]
    %vm79 = vcmp.ne.s32.totalorder %v63, 0
    %vm80 = vcmp.ne.s32.totalorder %v64, 0
    %vm81 = vcmp.ne.s32.totalorder %v65, 0
    %vm82 = vcmp.ne.s32.totalorder %v66, 0
    %vm83 = vcmp.ne.s32.totalorder %v67, 0
    %vm84 = vcmp.ne.s32.totalorder %v68, 0
    %vm85 = vcmp.ne.s32.totalorder %v69, 0
    %vm86 = vcmp.ne.s32.totalorder %v70, 0
    %vm87 = vcmp.ne.s32.totalorder %v71, 0
    %vm88 = vcmp.ne.s32.totalorder %v72, 0
    %vm89 = vcmp.ne.s32.totalorder %v73, 0
    %vm90 = vcmp.ne.s32.totalorder %v74, 0
    %vm91 = vcmp.ne.s32.totalorder %v75, 0
    %vm92 = vcmp.ne.s32.totalorder %v76, 0
    %vm93 = vcmp.ne.s32.totalorder %v77, 0
    %vm94 = vcmp.ne.s32.totalorder %v78, 0
    %v95 = vand.u32 2147483647, %v31
    %v96 = vand.u32 2147483647, %v32
    %v97 = vand.u32 2147483647, %v33
    %v98 = vand.u32 2147483647, %v34
    %v99 = vand.u32 2147483647, %v35
    %v100 = vand.u32 2147483647, %v36
    %v101 = vand.u32 2147483647, %v37
    %v102 = vand.u32 2147483647, %v38
    %v103 = vand.u32 2147483647, %v39
    %v104 = vand.u32 2147483647, %v40
    %v105 = vand.u32 2147483647, %v41
    %v106 = vand.u32 2147483647, %v42
    %v107 = vand.u32 2147483647, %v43
    %v108 = vand.u32 2147483647, %v44
    %v109 = vand.u32 2147483647, %v45
    %v110 = vand.u32 2147483647, %v46
    %v111 = vsub.f32 0.0, %v95
    %v112 = vsub.f32 0.0, %v96
    %v113 = vsub.f32 0.0, %v97
    %v114 = vsub.f32 0.0, %v98
    %v115 = vsub.f32 0.0, %v99
    %v116 = vsub.f32 0.0, %v100
    %v117 = vsub.f32 0.0, %v101
    %v118 = vsub.f32 0.0, %v102
    %v119 = vsub.f32 0.0, %v103
    %v120 = vsub.f32 0.0, %v104
    %v121 = vsub.f32 0.0, %v105
    %v122 = vsub.f32 0.0, %v106
    %v123 = vsub.f32 0.0, %v107
    %v124 = vsub.f32 0.0, %v108
    %v125 = vsub.f32 0.0, %v109
    %v126 = vsub.f32 0.0, %v110
    %v127 = vmul.f32 %v111, 1.442695
    %v128 = vpow.pop %v127
    %v129 = vmul.f32 %v112, 1.442695
    %v130 = vpow.pop %v129
    %v131 = vmul.f32 %v113, 1.442695
    %v132 = vpow.pop %v131
    %v133 = vmul.f32 %v114, 1.442695
    %v134 = vpow.pop %v133
    %v135 = vmul.f32 %v115, 1.442695
    %v136 = vpow.pop %v135
    %v137 = vmul.f32 %v116, 1.442695
    %v138 = vpow.pop %v137
    %v139 = vmul.f32 %v117, 1.442695
    %v140 = vpow.pop %v139
    %v141 = vmul.f32 %v118, 1.442695
    %v142 = vpow.pop %v141
    %v143 = vmul.f32 %v119, 1.442695
    %v144 = vpow.pop %v143
    %v145 = vmul.f32 %v120, 1.442695
    %v146 = vpow.pop %v145
    %v147 = vmul.f32 %v121, 1.442695
    %v148 = vpow.pop %v147
    %v149 = vmul.f32 %v122, 1.442695
    %v150 = vpow.pop %v149
    %v151 = vmul.f32 %v123, 1.442695
    %v152 = vpow.pop %v151
    %v153 = vmul.f32 %v124, 1.442695
    %v154 = vpow.pop %v153
    %v155 = vmul.f32 %v125, 1.442695
    %v156 = vpow.pop %v155
    %v157 = vmul.f32 %v126, 1.442695
    %v158 = vpow.pop %v157
    %vm159 = vcmp.ge.f32.partialorder %v31, 0.0
    %vm160 = vcmp.ge.f32.partialorder %v32, 0.0
    %vm161 = vcmp.ge.f32.partialorder %v33, 0.0
    %vm162 = vcmp.ge.f32.partialorder %v34, 0.0
    %vm163 = vcmp.ge.f32.partialorder %v35, 0.0
    %vm164 = vcmp.ge.f32.partialorder %v36, 0.0
    %vm165 = vcmp.ge.f32.partialorder %v37, 0.0
    %vm166 = vcmp.ge.f32.partialorder %v38, 0.0
    %vm167 = vcmp.ge.f32.partialorder %v39, 0.0
    %vm168 = vcmp.ge.f32.partialorder %v40, 0.0
    %vm169 = vcmp.ge.f32.partialorder %v41, 0.0
    %vm170 = vcmp.ge.f32.partialorder %v42, 0.0
    %vm171 = vcmp.ge.f32.partialorder %v43, 0.0
    %vm172 = vcmp.ge.f32.partialorder %v44, 0.0
    %vm173 = vcmp.ge.f32.partialorder %v45, 0.0
    %vm174 = vcmp.ge.f32.partialorder %v46, 0.0
    %v175 = vsel %vm159, 1.0, %v128
    %v176 = vsel %vm160, 1.0, %v130
    %v177 = vsel %vm161, 1.0, %v132
    %v178 = vsel %vm162, 1.0, %v134
    %v179 = vsel %vm163, 1.0, %v136
    %v180 = vsel %vm164, 1.0, %v138
    %v181 = vsel %vm165, 1.0, %v140
    %v182 = vsel %vm166, 1.0, %v142
    %v183 = vsel %vm167, 1.0, %v144
    %v184 = vsel %vm168, 1.0, %v146
    %v185 = vsel %vm169, 1.0, %v148
    %v186 = vsel %vm170, 1.0, %v150
    %v187 = vsel %vm171, 1.0, %v152
    %v188 = vsel %vm172, 1.0, %v154
    %v189 = vsel %vm173, 1.0, %v156
    %v190 = vsel %vm174, 1.0, %v158
    %v191 = vadd.f32 %v128, 1.0
    %v192 = vadd.f32 %v130, 1.0
    %v193 = vadd.f32 %v132, 1.0
    %v194 = vadd.f32 %v134, 1.0
    %v195 = vadd.f32 %v136, 1.0
    %v196 = vadd.f32 %v138, 1.0
    %v197 = vadd.f32 %v140, 1.0
    %v198 = vadd.f32 %v142, 1.0
    %v199 = vadd.f32 %v144, 1.0
    %v200 = vadd.f32 %v146, 1.0
    %v201 = vadd.f32 %v148, 1.0
    %v202 = vadd.f32 %v150, 1.0
    %v203 = vadd.f32 %v152, 1.0
    %v204 = vadd.f32 %v154, 1.0
    %v205 = vadd.f32 %v156, 1.0
    %v206 = vadd.f32 %v158, 1.0
    %v207 = vrcp.pop %v191
    %v208 = vmul.f32 %v191, %v207
    %v209 = vsub.f32 1.0, %v208
    %v210 = vmul.f32 %v207, %v209
    %v211 = vadd.f32 %v207, %v210
    %vm212 = vweird.f32 %v191
    %vm213 = vweird.f32 %v207
    %vm214 = vmor %vm212, %vm213
    %v215 = vsel %vm214, %v207, %v211
    %v216 = vand.u32 2147483647, %v191
    %vm217 = vcmp.eq.f32.partialorder %v216, 8.507059e+37
    %v218 = vand.u32 %v191, 2147483648
    %v219 = vor.u32 1.1754944e-38, %v218
    %v220 = vsel %vm217, %v219, %v215
    %v221 = vmul.f32 %v175, %v220
    %v222 = vrcp.pop %v192
    %v223 = vmul.f32 %v192, %v222
    %v224 = vsub.f32 1.0, %v223
    %v225 = vmul.f32 %v222, %v224
    %v226 = vadd.f32 %v222, %v225
    %vm227 = vweird.f32 %v192
    %vm228 = vweird.f32 %v222
    %vm229 = vmor %vm227, %vm228
    %v230 = vsel %vm229, %v222, %v226
    %v231 = vand.u32 2147483647, %v192
    %vm232 = vcmp.eq.f32.partialorder %v231, 8.507059e+37
    %v233 = vand.u32 %v192, 2147483648
    %v234 = vor.u32 1.1754944e-38, %v233
    %v235 = vsel %vm232, %v234, %v230
    %v236 = vmul.f32 %v176, %v235
    %v237 = vrcp.pop %v193
    %v238 = vmul.f32 %v193, %v237
    %v239 = vsub.f32 1.0, %v238
    %v240 = vmul.f32 %v237, %v239
    %v241 = vadd.f32 %v237, %v240
    %vm242 = vweird.f32 %v193
    %vm243 = vweird.f32 %v237
    %vm244 = vmor %vm242, %vm243
    %v245 = vsel %vm244, %v237, %v241
    %v246 = vand.u32 2147483647, %v193
    %vm247 = vcmp.eq.f32.partialorder %v246, 8.507059e+37
    %v248 = vand.u32 %v193, 2147483648
    %v249 = vor.u32 1.1754944e-38, %v248
    %v250 = vsel %vm247, %v249, %v245
    %v251 = vmul.f32 %v177, %v250
    %v252 = vrcp.pop %v194
    %v253 = vmul.f32 %v194, %v252
    %v254 = vsub.f32 1.0, %v253
    %v255 = vmul.f32 %v252, %v254
    %v256 = vadd.f32 %v252, %v255
    %vm257 = vweird.f32 %v194
    %vm258 = vweird.f32 %v252
    %vm259 = vmor %vm257, %vm258
    %v260 = vsel %vm259, %v252, %v256
    %v261 = vand.u32 2147483647, %v194
    %vm262 = vcmp.eq.f32.partialorder %v261, 8.507059e+37
    %v263 = vand.u32 %v194, 2147483648
    %v264 = vor.u32 1.1754944e-38, %v263
    %v265 = vsel %vm262, %v264, %v260
    %v266 = vmul.f32 %v178, %v265
    %v267 = vrcp.pop %v195
    %v268 = vmul.f32 %v195, %v267
    %v269 = vsub.f32 1.0, %v268
    %v270 = vmul.f32 %v267, %v269
    %v271 = vadd.f32 %v267, %v270
    %vm272 = vweird.f32 %v195
    %vm273 = vweird.f32 %v267
    %vm274 = vmor %vm272, %vm273
    %v275 = vsel %vm274, %v267, %v271
    %v276 = vand.u32 2147483647, %v195
    %vm277 = vcmp.eq.f32.partialorder %v276, 8.507059e+37
    %v278 = vand.u32 %v195, 2147483648
    %v279 = vor.u32 1.1754944e-38, %v278
    %v280 = vsel %vm277, %v279, %v275
    %v281 = vmul.f32 %v179, %v280
    %v282 = vrcp.pop %v196
    %v283 = vmul.f32 %v196, %v282
    %v284 = vsub.f32 1.0, %v283
    %v285 = vmul.f32 %v282, %v284
    %v286 = vadd.f32 %v282, %v285
    %vm287 = vweird.f32 %v196
    %vm288 = vweird.f32 %v282
    %vm289 = vmor %vm287, %vm288
    %v290 = vsel %vm289, %v282, %v286
    %v291 = vand.u32 2147483647, %v196
    %vm292 = vcmp.eq.f32.partialorder %v291, 8.507059e+37
    %v293 = vand.u32 %v196, 2147483648
    %v294 = vor.u32 1.1754944e-38, %v293
    %v295 = vsel %vm292, %v294, %v290
    %v296 = vmul.f32 %v180, %v295
    %v297 = vrcp.pop %v197
    %v298 = vmul.f32 %v197, %v297
    %v299 = vsub.f32 1.0, %v298
    %v300 = vmul.f32 %v297, %v299
    %v301 = vadd.f32 %v297, %v300
    %vm302 = vweird.f32 %v197
    %vm303 = vweird.f32 %v297
    %vm304 = vmor %vm302, %vm303
    %v305 = vsel %vm304, %v297, %v301
    %v306 = vand.u32 2147483647, %v197
    %vm307 = vcmp.eq.f32.partialorder %v306, 8.507059e+37
    %v308 = vand.u32 %v197, 2147483648
    %v309 = vor.u32 1.1754944e-38, %v308
    %v310 = vsel %vm307, %v309, %v305
    %v311 = vmul.f32 %v181, %v310
    %v312 = vrcp.pop %v198
    %v313 = vmul.f32 %v198, %v312
    %v314 = vsub.f32 1.0, %v313
    %v315 = vmul.f32 %v312, %v314
    %v316 = vadd.f32 %v312, %v315
    %vm317 = vweird.f32 %v198
    %vm318 = vweird.f32 %v312
    %vm319 = vmor %vm317, %vm318
    %v320 = vsel %vm319, %v312, %v316
    %v321 = vand.u32 2147483647, %v198
    %vm322 = vcmp.eq.f32.partialorder %v321, 8.507059e+37
    %v323 = vand.u32 %v198, 2147483648
    %v324 = vor.u32 1.1754944e-38, %v323
    %v325 = vsel %vm322, %v324, %v320
    %v326 = vmul.f32 %v182, %v325
    %v327 = vrcp.pop %v199
    %v328 = vmul.f32 %v199, %v327
    %v329 = vsub.f32 1.0, %v328
    %v330 = vmul.f32 %v327, %v329
    %v331 = vadd.f32 %v327, %v330
    %vm332 = vweird.f32 %v199
    %vm333 = vweird.f32 %v327
    %vm334 = vmor %vm332, %vm333
    %v335 = vsel %vm334, %v327, %v331
    %v336 = vand.u32 2147483647, %v199
    %vm337 = vcmp.eq.f32.partialorder %v336, 8.507059e+37
    %v338 = vand.u32 %v199, 2147483648
    %v339 = vor.u32 1.1754944e-38, %v338
    %v340 = vsel %vm337, %v339, %v335
    %v341 = vmul.f32 %v183, %v340
    %v342 = vrcp.pop %v200
    %v343 = vmul.f32 %v200, %v342
    %v344 = vsub.f32 1.0, %v343
    %v345 = vmul.f32 %v342, %v344
    %v346 = vadd.f32 %v342, %v345
    %vm347 = vweird.f32 %v200
    %vm348 = vweird.f32 %v342
    %vm349 = vmor %vm347, %vm348
    %v350 = vsel %vm349, %v342, %v346
    %v351 = vand.u32 2147483647, %v200
    %vm352 = vcmp.eq.f32.partialorder %v351, 8.507059e+37
    %v353 = vand.u32 %v200, 2147483648
    %v354 = vor.u32 1.1754944e-38, %v353
    %v355 = vsel %vm352, %v354, %v350
    %v356 = vmul.f32 %v184, %v355
    %v357 = vrcp.pop %v201
    %v358 = vmul.f32 %v201, %v357
    %v359 = vsub.f32 1.0, %v358
    %v360 = vmul.f32 %v357, %v359
    %v361 = vadd.f32 %v357, %v360
    %vm362 = vweird.f32 %v201
    %vm363 = vweird.f32 %v357
    %vm364 = vmor %vm362, %vm363
    %v365 = vsel %vm364, %v357, %v361
    %v366 = vand.u32 2147483647, %v201
    %vm367 = vcmp.eq.f32.partialorder %v366, 8.507059e+37
    %v368 = vand.u32 %v201, 2147483648
    %v369 = vor.u32 1.1754944e-38, %v368
    %v370 = vsel %vm367, %v369, %v365
    %v371 = vmul.f32 %v185, %v370
    %v372 = vrcp.pop %v202
    %v373 = vmul.f32 %v202, %v372
    %v374 = vsub.f32 1.0, %v373
    %v375 = vmul.f32 %v372, %v374
    %v376 = vadd.f32 %v372, %v375
    %vm377 = vweird.f32 %v202
    %vm378 = vweird.f32 %v372
    %vm379 = vmor %vm377, %vm378
    %v380 = vsel %vm379, %v372, %v376
    %v381 = vand.u32 2147483647, %v202
    %vm382 = vcmp.eq.f32.partialorder %v381, 8.507059e+37
    %v383 = vand.u32 %v202, 2147483648
    %v384 = vor.u32 1.1754944e-38, %v383
    %v385 = vsel %vm382, %v384, %v380
    %v386 = vmul.f32 %v186, %v385
    %v387 = vrcp.pop %v203
    %v388 = vmul.f32 %v203, %v387
    %v389 = vsub.f32 1.0, %v388
    %v390 = vmul.f32 %v387, %v389
    %v391 = vadd.f32 %v387, %v390
    %vm392 = vweird.f32 %v203
    %vm393 = vweird.f32 %v387
    %vm394 = vmor %vm392, %vm393
    %v395 = vsel %vm394, %v387, %v391
    %v396 = vand.u32 2147483647, %v203
    %vm397 = vcmp.eq.f32.partialorder %v396, 8.507059e+37
    %v398 = vand.u32 %v203, 2147483648
    %v399 = vor.u32 1.1754944e-38, %v398
    %v400 = vsel %vm397, %v399, %v395
    %v401 = vmul.f32 %v187, %v400
    %v402 = vrcp.pop %v204
    %v403 = vmul.f32 %v204, %v402
    %v404 = vsub.f32 1.0, %v403
    %v405 = vmul.f32 %v402, %v404
    %v406 = vadd.f32 %v402, %v405
    %vm407 = vweird.f32 %v204
    %vm408 = vweird.f32 %v402
    %vm409 = vmor %vm407, %vm408
    %v410 = vsel %vm409, %v402, %v406
    %v411 = vand.u32 2147483647, %v204
    %vm412 = vcmp.eq.f32.partialorder %v411, 8.507059e+37
    %v413 = vand.u32 %v204, 2147483648
    %v414 = vor.u32 1.1754944e-38, %v413
    %v415 = vsel %vm412, %v414, %v410
    %v416 = vmul.f32 %v188, %v415
    %v417 = vrcp.pop %v205
    %v418 = vmul.f32 %v205, %v417
    %v419 = vsub.f32 1.0, %v418
    %v420 = vmul.f32 %v417, %v419
    %v421 = vadd.f32 %v417, %v420
    %vm422 = vweird.f32 %v205
    %vm423 = vweird.f32 %v417
    %vm424 = vmor %vm422, %vm423
    %v425 = vsel %vm424, %v417, %v421
    %v426 = vand.u32 2147483647, %v205
    %vm427 = vcmp.eq.f32.partialorder %v426, 8.507059e+37
    %v428 = vand.u32 %v205, 2147483648
    %v429 = vor.u32 1.1754944e-38, %v428
    %v430 = vsel %vm427, %v429, %v425
    %v431 = vmul.f32 %v189, %v430
    %v432 = vrcp.pop %v206
    %v433 = vmul.f32 %v206, %v432
    %v434 = vsub.f32 1.0, %v433
    %v435 = vmul.f32 %v432, %v434
    %v436 = vadd.f32 %v432, %v435
    %vm437 = vweird.f32 %v206
    %vm438 = vweird.f32 %v432
    %vm439 = vmor %vm437, %vm438
    %v440 = vsel %vm439, %v432, %v436
    %v441 = vand.u32 2147483647, %v206
    %vm442 = vcmp.eq.f32.partialorder %v441, 8.507059e+37
    %v443 = vand.u32 %v206, 2147483648
    %v444 = vor.u32 1.1754944e-38, %v443
    %v445 = vsel %vm442, %v444, %v440
    %v446 = vmul.f32 %v190, %v445
    %v447 = vadd.f32 %v128, 1.0
    %v448 = vlog2.pop %v447
    %v449 = vmul.f32 %v448, 0.6931472
    %v450 = vmul.f32 -0.5, %v128
    %v451 = vadd.f32 %v450, 1.0
    %v452 = vmul.f32 %v451, %v128
    %v453 = vand.u32 2147483647, %v128
    %vm454 = vcmp.lt.f32.partialorder %v453, 0.0004427343
    %v455 = vsel %vm454, %v452, %v449
    %v456 = vadd.f32 %v130, 1.0
    %v457 = vlog2.pop %v456
    %v458 = vmul.f32 %v457, 0.6931472
    %v459 = vmul.f32 -0.5, %v130
    %v460 = vadd.f32 %v459, 1.0
    %v461 = vmul.f32 %v460, %v130
    %v462 = vand.u32 2147483647, %v130
    %vm463 = vcmp.lt.f32.partialorder %v462, 0.0004427343
    %v464 = vsel %vm463, %v461, %v458
    %v465 = vadd.f32 %v132, 1.0
    %v466 = vlog2.pop %v465
    %v467 = vmul.f32 %v466, 0.6931472
    %v468 = vmul.f32 -0.5, %v132
    %v469 = vadd.f32 %v468, 1.0
    %v470 = vmul.f32 %v469, %v132
    %v471 = vand.u32 2147483647, %v132
    %vm472 = vcmp.lt.f32.partialorder %v471, 0.0004427343
    %v473 = vsel %vm472, %v470, %v467
    %v474 = vadd.f32 %v134, 1.0
    %v475 = vlog2.pop %v474
    %v476 = vmul.f32 %v475, 0.6931472
    %v477 = vmul.f32 -0.5, %v134
    %v478 = vadd.f32 %v477, 1.0
    %v479 = vmul.f32 %v478, %v134
    %v480 = vand.u32 2147483647, %v134
    %vm481 = vcmp.lt.f32.partialorder %v480, 0.0004427343
    %v482 = vsel %vm481, %v479, %v476
    %v483 = vadd.f32 %v136, 1.0
    %v484 = vlog2.pop %v483
    %v485 = vmul.f32 %v484, 0.6931472
    %v486 = vmul.f32 -0.5, %v136
    %v487 = vadd.f32 %v486, 1.0
    %v488 = vmul.f32 %v487, %v136
    %v489 = vand.u32 2147483647, %v136
    %vm490 = vcmp.lt.f32.partialorder %v489, 0.0004427343
    %v491 = vsel %vm490, %v488, %v485
    %v492 = vadd.f32 %v138, 1.0
    %v493 = vlog2.pop %v492
    %v494 = vmul.f32 %v493, 0.6931472
    %v495 = vmul.f32 -0.5, %v138
    %v496 = vadd.f32 %v495, 1.0
    %v497 = vmul.f32 %v496, %v138
    %v498 = vand.u32 2147483647, %v138
    %vm499 = vcmp.lt.f32.partialorder %v498, 0.0004427343
    %v500 = vsel %vm499, %v497, %v494
    %v501 = vadd.f32 %v140, 1.0
    %v502 = vlog2.pop %v501
    %v503 = vmul.f32 %v502, 0.6931472
    %v504 = vmul.f32 -0.5, %v140
    %v505 = vadd.f32 %v504, 1.0
    %v506 = vmul.f32 %v505, %v140
    %v507 = vand.u32 2147483647, %v140
    %vm508 = vcmp.lt.f32.partialorder %v507, 0.0004427343
    %v509 = vsel %vm508, %v506, %v503
    %v510 = vadd.f32 %v142, 1.0
    %v511 = vlog2.pop %v510
    %v512 = vmul.f32 %v511, 0.6931472
    %v513 = vmul.f32 -0.5, %v142
    %v514 = vadd.f32 %v513, 1.0
    %v515 = vmul.f32 %v514, %v142
    %v516 = vand.u32 2147483647, %v142
    %vm517 = vcmp.lt.f32.partialorder %v516, 0.0004427343
    %v518 = vsel %vm517, %v515, %v512
    %v519 = vadd.f32 %v144, 1.0
    %v520 = vlog2.pop %v519
    %v521 = vmul.f32 %v520, 0.6931472
    %v522 = vmul.f32 -0.5, %v144
    %v523 = vadd.f32 %v522, 1.0
    %v524 = vmul.f32 %v523, %v144
    %v525 = vand.u32 2147483647, %v144
    %vm526 = vcmp.lt.f32.partialorder %v525, 0.0004427343
    %v527 = vsel %vm526, %v524, %v521
    %v528 = vadd.f32 %v146, 1.0
    %v529 = vlog2.pop %v528
    %v530 = vmul.f32 %v529, 0.6931472
    %v531 = vmul.f32 -0.5, %v146
    %v532 = vadd.f32 %v531, 1.0
    %v533 = vmul.f32 %v532, %v146
    %v534 = vand.u32 2147483647, %v146
    %vm535 = vcmp.lt.f32.partialorder %v534, 0.0004427343
    %v536 = vsel %vm535, %v533, %v530
    %v537 = vadd.f32 %v148, 1.0
    %v538 = vlog2.pop %v537
    %v539 = vmul.f32 %v538, 0.6931472
    %v540 = vmul.f32 -0.5, %v148
    %v541 = vadd.f32 %v540, 1.0
    %v542 = vmul.f32 %v541, %v148
    %v543 = vand.u32 2147483647, %v148
    %vm544 = vcmp.lt.f32.partialorder %v543, 0.0004427343
    %v545 = vsel %vm544, %v542, %v539
    %v546 = vadd.f32 %v150, 1.0
    %v547 = vlog2.pop %v546
    %v548 = vmul.f32 %v547, 0.6931472
    %v549 = vmul.f32 -0.5, %v150
    %v550 = vadd.f32 %v549, 1.0
    %v551 = vmul.f32 %v550, %v150
    %v552 = vand.u32 2147483647, %v150
    %vm553 = vcmp.lt.f32.partialorder %v552, 0.0004427343
    %v554 = vsel %vm553, %v551, %v548
    %v555 = vadd.f32 %v152, 1.0
    %v556 = vlog2.pop %v555
    %v557 = vmul.f32 %v556, 0.6931472
    %v558 = vmul.f32 -0.5, %v152
    %v559 = vadd.f32 %v558, 1.0
    %v560 = vmul.f32 %v559, %v152
    %v561 = vand.u32 2147483647, %v152
    %vm562 = vcmp.lt.f32.partialorder %v561, 0.0004427343
    %v563 = vsel %vm562, %v560, %v557
    %v564 = vadd.f32 %v154, 1.0
    %v565 = vlog2.pop %v564
    %v566 = vmul.f32 %v565, 0.6931472
    %v567 = vmul.f32 -0.5, %v154
    %v568 = vadd.f32 %v567, 1.0
    %v569 = vmul.f32 %v568, %v154
    %v570 = vand.u32 2147483647, %v154
    %vm571 = vcmp.lt.f32.partialorder %v570, 0.0004427343
    %v572 = vsel %vm571, %v569, %v566
    %v573 = vadd.f32 %v156, 1.0
    %v574 = vlog2.pop %v573
    %v575 = vmul.f32 %v574, 0.6931472
    %v576 = vmul.f32 -0.5, %v156
    %v577 = vadd.f32 %v576, 1.0
    %v578 = vmul.f32 %v577, %v156
    %v579 = vand.u32 2147483647, %v156
    %vm580 = vcmp.lt.f32.partialorder %v579, 0.0004427343
    %v581 = vsel %vm580, %v578, %v575
    %v582 = vadd.f32 %v158, 1.0
    %v583 = vlog2.pop %v582
    %v584 = vmul.f32 %v583, 0.6931472
    %v585 = vmul.f32 -0.5, %v158
    %v586 = vadd.f32 %v585, 1.0
    %v587 = vmul.f32 %v586, %v158
    %v588 = vand.u32 2147483647, %v158
    %vm589 = vcmp.lt.f32.partialorder %v588, 0.0004427343
    %v590 = vsel %vm589, %v587, %v584
    %v591 = vmax.f32 %v31, 0.0
    %v592 = vmax.f32 %v32, 0.0
    %v593 = vmax.f32 %v33, 0.0
    %v594 = vmax.f32 %v34, 0.0
    %v595 = vmax.f32 %v35, 0.0
    %v596 = vmax.f32 %v36, 0.0
    %v597 = vmax.f32 %v37, 0.0
    %v598 = vmax.f32 %v38, 0.0
    %v599 = vmax.f32 %v39, 0.0
    %v600 = vmax.f32 %v40, 0.0
    %v601 = vmax.f32 %v41, 0.0
    %v602 = vmax.f32 %v42, 0.0
    %v603 = vmax.f32 %v43, 0.0
    %v604 = vmax.f32 %v44, 0.0
    %v605 = vmax.f32 %v45, 0.0
    %v606 = vmax.f32 %v46, 0.0
    %v607 = vadd.f32 %v591, %v455
    %v608 = vadd.f32 %v592, %v464
    %v609 = vadd.f32 %v593, %v473
    %v610 = vadd.f32 %v594, %v482
    %v611 = vadd.f32 %v595, %v491
    %v612 = vadd.f32 %v596, %v500
    %v613 = vadd.f32 %v597, %v509
    %v614 = vadd.f32 %v598, %v518
    %v615 = vadd.f32 %v599, %v527
    %v616 = vadd.f32 %v600, %v536
    %v617 = vadd.f32 %v601, %v545
    %v618 = vadd.f32 %v602, %v554
    %v619 = vadd.f32 %v603, %v563
    %v620 = vadd.f32 %v604, %v572
    %v621 = vadd.f32 %v605, %v581
    %v622 = vadd.f32 %v606, %v590
    %v623 = vmul.f32 %v31, %v47
    %v624 = vmul.f32 %v32, %v48
    %v625 = vmul.f32 %v33, %v49
    %v626 = vmul.f32 %v34, %v50
    %v627 = vmul.f32 %v35, %v51
    %v628 = vmul.f32 %v36, %v52
    %v629 = vmul.f32 %v37, %v53
    %v630 = vmul.f32 %v38, %v54
    %v631 = vmul.f32 %v39, %v55
    %v632 = vmul.f32 %v40, %v56
    %v633 = vmul.f32 %v41, %v57
    %v634 = vmul.f32 %v42, %v58
    %v635 = vmul.f32 %v43, %v59
    %v636 = vmul.f32 %v44, %v60
    %v637 = vmul.f32 %v45, %v61
    %v638 = vmul.f32 %v46, %v62
    %v639 = vsub.f32 %v607, %v623
    %v640 = vsub.f32 %v608, %v624
    %v641 = vsub.f32 %v609, %v625
    %v642 = vsub.f32 %v610, %v626
    %v643 = vsub.f32 %v611, %v627
    %v644 = vsub.f32 %v612, %v628
    %v645 = vsub.f32 %v613, %v629
    %v646 = vsub.f32 %v614, %v630
    %v647 = vsub.f32 %v615, %v631
    %v648 = vsub.f32 %v616, %v632
    %v649 = vsub.f32 %v617, %v633
    %v650 = vsub.f32 %v618, %v634
    %v651 = vsub.f32 %v619, %v635
    %v652 = vsub.f32 %v620, %v636
    %v653 = vsub.f32 %v621, %v637
    %v654 = vsub.f32 %v622, %v638
    %v655 = vsel %vm79, %v639, %v607
    %v656 = vsel %vm80, %v640, %v608
    %v657 = vsel %vm81, %v641, %v609
    %v658 = vsel %vm82, %v642, %v610
    %v659 = vsel %vm83, %v643, %v611
    %v660 = vsel %vm84, %v644, %v612
    %v661 = vsel %vm85, %v645, %v613
    %v662 = vsel %vm86, %v646, %v614
    %v663 = vsel %vm87, %v647, %v615
    %v664 = vsel %vm88, %v648, %v616
    %v665 = vsel %vm89, %v649, %v617
    %v666 = vsel %vm90, %v650, %v618
    %v667 = vsel %vm91, %v651, %v619
    %v668 = vsel %vm92, %v652, %v620
    %v669 = vsel %vm93, %v653, %v621
    %v670 = vsel %vm94, %v654, %v622
    %v671 = vsub.f32 %v47, %v221
    %v672 = vsub.f32 %v48, %v236
    %v673 = vsub.f32 %v49, %v251
    %v674 = vsub.f32 %v50, %v266
    %v675 = vsub.f32 %v51, %v281
    %v676 = vsub.f32 %v52, %v296
    %v677 = vsub.f32 %v53, %v311
    %v678 = vsub.f32 %v54, %v326
    %v679 = vsub.f32 %v55, %v341
    %v680 = vsub.f32 %v56, %v356
    %v681 = vsub.f32 %v57, %v371
    %v682 = vsub.f32 %v58, %v386
    %v683 = vsub.f32 %v59, %v401
    %v684 = vsub.f32 %v60, %v416
    %v685 = vsub.f32 %v61, %v431
    %v686 = vsub.f32 %v62, %v446
    %v687 = vand.u32 2147483647, %v671
    %v688 = vand.u32 2147483647, %v672
    %v689 = vand.u32 2147483647, %v673
    %v690 = vand.u32 2147483647, %v674
    %v691 = vand.u32 2147483647, %v675
    %v692 = vand.u32 2147483647, %v676
    %v693 = vand.u32 2147483647, %v677
    %v694 = vand.u32 2147483647, %v678
    %v695 = vand.u32 2147483647, %v679
    %v696 = vand.u32 2147483647, %v680
    %v697 = vand.u32 2147483647, %v681
    %v698 = vand.u32 2147483647, %v682
    %v699 = vand.u32 2147483647, %v683
    %v700 = vand.u32 2147483647, %v684
    %v701 = vand.u32 2147483647, %v685
    %v702 = vand.u32 2147483647, %v686
    %v703 = vsel %vm79, %v687, %v221
    %v704 = vsel %vm80, %v688, %v236
    %v705 = vsel %vm81, %v689, %v251
    %v706 = vsel %vm82, %v690, %v266
    %v707 = vsel %vm83, %v691, %v281
    %v708 = vsel %vm84, %v692, %v296
    %v709 = vsel %vm85, %v693, %v311
    %v710 = vsel %vm86, %v694, %v326
    %v711 = vsel %vm87, %v695, %v341
    %v712 = vsel %vm88, %v696, %v356
    %v713 = vsel %vm89, %v697, %v371
    %v714 = vsel %vm90, %v698, %v386
    %v715 = vsel %vm91, %v699, %v401
    %v716 = vsel %vm92, %v700, %v416
    %v717 = vsel %vm93, %v701, %v431
    %v718 = vsel %vm94, %v702, %v446
    %v719 = vmul.f32 %v703, %v703
    %v720 = vmul.f32 %v704, %v704
    %v721 = vmul.f32 %v705, %v705
    %v722 = vmul.f32 %v706, %v706
    %v723 = vmul.f32 %v707, %v707
    %v724 = vmul.f32 %v708, %v708
    %v725 = vmul.f32 %v709, %v709
    %v726 = vmul.f32 %v710, %v710
    %v727 = vmul.f32 %v711, %v711
    %v728 = vmul.f32 %v712, %v712
    %v729 = vmul.f32 %v713, %v713
    %v730 = vmul.f32 %v714, %v714
    %v731 = vmul.f32 %v715, %v715
    %v732 = vmul.f32 %v716, %v716
    %v733 = vmul.f32 %v717, %v717
    %v734 = vmul.f32 %v718, %v718
    %v735 = vmul.f32 %v655, %v719
    %v736 = vmul.f32 %v656, %v720
    %v737 = vmul.f32 %v657, %v721
    %v738 = vmul.f32 %v658, %v722
    %v739 = vmul.f32 %v659, %v723
    %v740 = vmul.f32 %v660, %v724
    %v741 = vmul.f32 %v661, %v725
    %v742 = vmul.f32 %v662, %v726
    %v743 = vmul.f32 %v663, %v727
    %v744 = vmul.f32 %v664, %v728
    %v745 = vmul.f32 %v665, %v729
    %v746 = vmul.f32 %v666, %v730
    %v747 = vmul.f32 %v667, %v731
    %v748 = vmul.f32 %v668, %v732
    %v749 = vmul.f32 %v669, %v733
    %v750 = vmul.f32 %v670, %v734
    %751 = vst [vmem:[#allocation5] sm:$0xff] %v735
    %752 = vst [vmem:[#allocation5 + $0x8] sm:$0xff] %v736
    %753 = vst [vmem:[#allocation5 + $0x10] sm:$0xff] %v737
    %754 = vst [vmem:[#allocation5 + $0x18] sm:$0xff] %v738
    %755 = vst [vmem:[#allocation5 + $0x20] sm:$0xff] %v739
    %756 = vst [vmem:[#allocation5 + $0x28] sm:$0xff] %v740
    %757 = vst [vmem:[#allocation5 + $0x30] sm:$0xff] %v741
    %758 = vst [vmem:[#allocation5 + $0x38] sm:$0xff] %v742
    %759 = vst [vmem:[#allocation5 + $0x40] sm:$0xff] %v743
    %760 = vst [vmem:[#allocation5 + $0x48] sm:$0xff] %v744
    %761 = vst [vmem:[#allocation5 + $0x50] sm:$0xff] %v745
    %762 = vst [vmem:[#allocation5 + $0x58] sm:$0xff] %v746
    %763 = vst [vmem:[#allocation5 + $0x60] sm:$0xff] %v747
    %764 = vst [vmem:[#allocation5 + $0x68] sm:$0xff] %v748
    %765 = vst [vmem:[#allocation5 + $0x70] sm:$0xff] %v749
    %766 = vst [vmem:[#allocation5 + $0x78] sm:$0xff] %v750
    // Predicated region
    $region18: #{tpu_custom_call.1} parent=1 // pred_check
      _
    $region19: #{tpu_custom_call.1} parent=1 // pred_check_branch
      %768 = sbr.rel (0) target = $region21
    $region20: #{tpu_custom_call.1} parent=1 // pred_region
      %770 = vsyncadd [#allocation4], 0
      %s771 = sshll.u32 [#allocation5], 4
      %s772 = int_to_ptr.vmem [resolvable:$true] %s771
      %s773 = sshll.u32 %s3, 4
      %s774 = int_to_ptr.hbm [resolvable:$true] %s773
      %779 = dma.vmem_to_hbm [thread:$0]  %s772, 2048, %s774, [#allocation4], 128, 128, 8
    $region21: #{tpu_custom_call.1} parent=1 // pred_fallthru
      _
    // Predicated region
    $region22: #{tpu_custom_call.1} parent=1 // pred_check
      _
    $region23: #{tpu_custom_call.1} parent=1 // pred_check_branch
      %781 = sbr.rel (0) target = $region25
    $region24: #{tpu_custom_call.1} parent=1 // pred_region
      %783 = dma.done [#allocation4], 2048
    $region25: #{tpu_custom_call.1} parent=1 // pred_fallthru
      _
    %784 = vsyncpa [#allocation3], 1
    %785 = vsyncpa [#allocation4], 1

</llo_original>
